<compile_context>
chip_gen: v6e
topology: v6e:2x2x1
jax: 0.10.0
libtpu: 0.0.40
codegen_flags: <defaults>
</compile_context>

<pallas_src>
import functools

import jax
import jax.numpy as jnp
from jax import lax
from jax.experimental import pallas as pl
from jax.experimental.pallas import tpu as pltpu

_LANES = 128
_EPS = 1e-8


# ----------------------------- Pallas kernel -----------------------------

def _disc_loss_sum_kernel(real_ref, fake_ref, out_ref, *, rows, block_rows,
                          blocks_per_core, num_cores, needs_row_mask):
    """Accumulates sum(log((r+eps)*(1-f+eps))) into a per-core (8,128) slab."""
    c = pl.program_id(0)
    b = pl.program_id(1)

    @pl.when(b == 0)
    def _init():
        out_ref[...] = jnp.zeros_like(out_ref)

    r = real_ref[...].astype(jnp.float32)
    f = fake_ref[...].astype(jnp.float32)

    # Fused single transcendental per element (review item 1).
    logp = jnp.log((r + _EPS) * ((1.0 - f) + _EPS))

    def _accumulate(x):
        # Vreg-wise partial sums: only VALU adds per step; the 8-sublane +
        # 128-lane reduce happens once, in the wrapper.
        out_ref[...] += x.reshape(block_rows // 8, 8, _LANES).sum(axis=0)

    if needs_row_mask:
        # Only the single global boundary block can contain out-of-bounds rows.
        global_last = num_cores * blocks_per_core - 1
        valid = rows - global_last * block_rows          # static python int
        is_boundary = jnp.logical_and(c == num_cores - 1, b == blocks_per_core - 1)

        @pl.when(is_boundary)
        def _masked():
            rowi = lax.broadcasted_iota(jnp.int32, logp.shape, 0)
            _accumulate(jnp.where(rowi < valid, logp, 0.0))

        @pl.when(jnp.logical_not(is_boundary))
        def _full():
            _accumulate(logp)
    else:
        _accumulate(logp)


# ----------------------------- wrapper -----------------------------

def discriminator_loss(d_outputs_real, d_outputs_fake, *,
                       max_block_rows=4096, min_pallas_elements=1024):
    assert d_outputs_real.shape == d_outputs_fake.shape, (
        d_outputs_real.shape, d_outputs_fake.shape)
    n = int(d_outputs_real.size)
    assert n > 0

    r = jnp.ravel(d_outputs_real)
    f = jnp.ravel(d_outputs_fake)

    # ---- tiny-input fast path (review item 8). For production PatchGAN maps a
    # larger threshold (~64K) can be used; kept low here so the examples below
    # exercise the Pallas path.
    if n < min_pallas_elements:
        s = jnp.sum(jnp.log((r.astype(jnp.float32) + _EPS) *
                            ((1.0 - f.astype(jnp.float32)) + _EPS)))
        return -s / jnp.float32(n)

    # ---- split off the ragged tail so the main body reshapes to (rows, 128)
    # with rows a multiple of 8. In the aligned (common) case this is a pure
    # bitcast: no padding, no HBM copies (review item 3).
    align = 8 * _LANES                       # 1024 elements
    n_main = (n // align) * align
    rows = n_main // _LANES

    if n_main == n:
        r_main, f_main = r, f
        tail_sum = jnp.float32(0.0)
    else:
        r_main = r[:n_main]
        f_main = f[:n_main]
        rt = r[n_main:].astype(jnp.float32)   # < 1024 elements, negligible
        ft = f[n_main:].astype(jnp.float32)
        tail_sum = jnp.sum(jnp.log((rt + _EPS) * ((1.0 - ft) + _EPS)))

    r_main = r_main.reshape(rows, _LANES)
    f_main = f_main.reshape(rows, _LANES)

    # ---- tiling
    block_rows = rows if rows <= max_block_rows else max_block_rows
    assert block_rows % 8 == 0 and rows % 8 == 0

    num_blocks = pl.cdiv(rows, block_rows)
    # v7x has 2 TensorCores: split the block axis across them when it divides
    # evenly (avoids fully out-of-bounds blocks). Serial / free on v5e / v6e.
    num_cores = 2 if (num_blocks >= 2 and num_blocks % 2 == 0) else 1
    blocks_per_core = num_blocks // num_cores
    needs_row_mask = (rows % block_rows) != 0

    kernel = functools.partial(
        _disc_loss_sum_kernel,
        rows=rows, block_rows=block_rows,
        blocks_per_core=blocks_per_core, num_cores=num_cores,
        needs_row_mask=needs_row_mask)

    in_spec = pl.BlockSpec((block_rows, _LANES),
                           lambda c, b: (c * blocks_per_core + b, 0))

    out = pl.pallas_call(
        kernel,
        out_shape=jax.ShapeDtypeStruct((num_cores * 8, _LANES), jnp.float32),
        grid_spec=pltpu.PrefetchScalarGridSpec(
            num_scalar_prefetch=0,
            grid=(num_cores, blocks_per_core),
            in_specs=[in_spec, in_spec],
            out_specs=pl.BlockSpec((8, _LANES), lambda c, b: (c, 0)),
        ),
        compiler_params=pltpu.CompilerParams(
            dimension_semantics=("parallel", "arbitrary")),
    )(r_main, f_main)

    main_sum = jnp.sum(out)                       # (num_cores*8, 128) -> scalar
    return -(main_sum + tail_sum) / jnp.float32(n)


class DiscriminatorLoss:
    """Drop-in equivalent of the PyTorch module's forward()."""

    def __call__(self, d_outputs_real, d_outputs_fake):
        return discriminator_loss(d_outputs_real, d_outputs_fake)


# ----------------------------- test -----------------------------

def _reference(d_real, d_fake):
    return jnp.mean(-jnp.log(d_real + _EPS) - jnp.log(1.0 - d_fake + _EPS))


def _check(loss, ref, tag):
    loss = jax.block_until_ready(loss)
    ref = jax.block_until_ready(ref)
    assert loss.shape == (), (tag, loss.shape)
    assert jnp.allclose(loss, ref, atol=1e-5, rtol=1e-5), (tag, float(loss), float(ref))


if __name__ == "__main__":
    loss_fn = DiscriminatorLoss()
    key = jax.random.PRNGKey(0)

    # 1) aligned PatchGAN-style maps: zero-copy bitcast path, single block.
    k1, k2, key = jax.random.split(key, 3)
    shape = (2, 4, 32, 32)                                     # 8192 elements
    d_real = jax.random.uniform(k1, shape, jnp.float32, 0.02, 0.98)
    d_fake = jax.random.uniform(k2, shape, jnp.float32, 0.02, 0.98)
    _check(loss_fn(d_real, d_fake), _reference(d_real, d_fake), "aligned")

    # 2) ragged element count: exercises the wrapper-side tail combine.
    k1, k2, key = jax.random.split(key, 3)
    shape2 = (3, 5, 7, 11)                                     # 1155 elements
    d_real2 = jax.random.uniform(k1, shape2, jnp.float32, 0.02, 0.98)
    d_fake2 = jax.random.uniform(k2, shape2, jnp.float32, 0.02, 0.98)
    _check(loss_fn(d_real2, d_fake2), _reference(d_real2, d_fake2), "ragged")

    # 3) multi-block grid with a partial boundary block and the 2-way
    #    ("parallel") core split, using a tiny block size to keep shapes small.
    k1, k2, key = jax.random.split(key, 3)
    shape3 = (7168,)                                           # rows = 56
    d_real3 = jax.random.uniform(k1, shape3, jnp.float32, 0.02, 0.98)
    d_fake3 = jax.random.uniform(k2, shape3, jnp.float32, 0.02, 0.98)
    loss3 = discriminator_loss(d_real3, d_fake3, max_block_rows=16)
    _check(loss3, _reference(d_real3, d_fake3), "multi-block")

    # 4) tiny input: jnp fast path.
    k1, k2, key = jax.random.split(key, 3)
    shape4 = (2, 1, 16, 16)                                    # 512 elements
    d_real4 = jax.random.uniform(k1, shape4, jnp.float32, 0.02, 0.98)
    d_fake4 = jax.random.uniform(k2, shape4, jnp.float32, 0.02, 0.98)
    _check(loss_fn(d_real4, d_fake4), _reference(d_real4, d_fake4), "tiny")

    print("KERNEL_OK")
</pallas_src>

<mosaic_0001>
module attributes {stable_mosaic.version = 11 : i64} {
  func.func @_disc_loss_sum_kernel(%arg0: i32, %arg1: i32, %arg2: memref<64x128xf32, #tpu.memory_space<vmem>>, %arg3: memref<64x128xf32, #tpu.memory_space<vmem>>, %arg4: memref<8x128xf32, #tpu.memory_space<vmem>>) attributes {dimension_semantics = [#tpu.dimension_semantics<parallel>, #tpu.dimension_semantics<arbitrary>], iteration_bounds = array<i64: 1, 1>, scalar_prefetch = 0 : i64, scratch_operands = 0 : i64, tpu.core_type = #tpu.core_type<tc>, window_params = [{transform_indices = @transform_0, window_bounds = array<i64: 64, 128>}, {transform_indices = @transform_1, window_bounds = array<i64: 64, 128>}, {transform_indices = @transform_2, window_bounds = array<i64: 8, 128>}]} {
    %c0_i32 = arith.constant 0 : i32
    %0 = arith.cmpi eq, %arg1, %c0_i32 : i32
    %1 = arith.extui %0 : i1 to i32
    %c0_i32_0 = arith.constant 0 : i32
    %2 = arith.cmpi ne, %1, %c0_i32_0 : i32
    scf.if %2 {
      %cst_11 = arith.constant 0.000000e+00 : f32
      %18 = vector.broadcast %cst_11 : f32 to vector<8x128xf32>
      %c0_12 = arith.constant 0 : index
      %c0_13 = arith.constant 0 : index
      %19 = vector.load %arg4[%c0_12, %c0_13] : memref<8x128xf32, #tpu.memory_space<vmem>>, vector<8x128xf32>
      tpu.vector_store %arg4[%c0_12, %c0_13], %18 {strides = array<i32>} : memref<8x128xf32, #tpu.memory_space<vmem>>, vector<8x128xf32>,
    } else {
    }
    %c0 = arith.constant 0 : index
    %c0_1 = arith.constant 0 : index
    %3 = vector.load %arg2[%c0, %c0_1] : memref<64x128xf32, #tpu.memory_space<vmem>>, vector<64x128xf32>
    %c0_2 = arith.constant 0 : index
    %c0_3 = arith.constant 0 : index
    %4 = vector.load %arg3[%c0_2, %c0_3] : memref<64x128xf32, #tpu.memory_space<vmem>>, vector<64x128xf32>
    %cst = arith.constant 9.99999993E-9 : f32
    %5 = vector.broadcast %cst : f32 to vector<64x128xf32>
    %6 = arith.addf %3, %5 : vector<64x128xf32>
    %cst_4 = arith.constant 1.000000e+00 : f32
    %7 = vector.broadcast %cst_4 : f32 to vector<64x128xf32>
    %8 = arith.subf %7, %4 : vector<64x128xf32>
    %cst_5 = arith.constant 9.99999993E-9 : f32
    %9 = vector.broadcast %cst_5 : f32 to vector<64x128xf32>
    %10 = arith.addf %8, %9 : vector<64x128xf32>
    %11 = arith.mulf %6, %10 : vector<64x128xf32>
    %12 = math.log %11 : vector<64x128xf32>
    %c0_6 = arith.constant 0 : index
    %c0_7 = arith.constant 0 : index
    %13 = vector.load %arg4[%c0_6, %c0_7] : memref<8x128xf32, #tpu.memory_space<vmem>>, vector<8x128xf32>
    %14 = vector.shape_cast %12 : vector<64x128xf32> to vector<8x8x128xf32>
    %cst_8 = arith.constant dense<0.000000e+00> : vector<8x128xf32>
    %15 = vector.multi_reduction <add>, %14, %cst_8 [0] : vector<8x8x128xf32> to vector<8x128xf32>
    %16 = arith.addf %13, %15 : vector<8x128xf32>
    %c0_9 = arith.constant 0 : index
    %c0_10 = arith.constant 0 : index
    %17 = vector.load %arg4[%c0_9, %c0_10] : memref<8x128xf32, #tpu.memory_space<vmem>>, vector<8x128xf32>
    tpu.vector_store %arg4[%c0_9, %c0_10], %16 {strides = array<i32>} : memref<8x128xf32, #tpu.memory_space<vmem>>, vector<8x128xf32>,
    return
  }
  func.func @transform_0(%arg0: i32, %arg1: i32) -> (i32, i32) {
    %c1_i32 = arith.constant 1 : i32
    %0 = arith.muli %arg0, %c1_i32 : i32
    %1 = arith.addi %0, %arg1 : i32
    %c0_i32 = arith.constant 0 : i32
    %c0_i32_0 = arith.constant 0 : i32
    return %1, %c0_i32 : i32, i32
  }
  func.func @transform_1(%arg0: i32, %arg1: i32) -> (i32, i32) {
    %c1_i32 = arith.constant 1 : i32
    %0 = arith.muli %arg0, %c1_i32 : i32
    %1 = arith.addi %0, %arg1 : i32
    %c0_i32 = arith.constant 0 : i32
    %c0_i32_0 = arith.constant 0 : i32
    return %1, %c0_i32 : i32, i32
  }
  func.func @transform_2(%arg0: i32, %arg1: i32) -> (i32, i32) {
    %c0_i32 = arith.constant 0 : i32
    %c0_i32_0 = arith.constant 0 : i32
    return %arg0, %c0_i32 : i32, i32
  }
}

</mosaic_0001>

<llo_original>
// kernel: tpu_custom_call.1
$region0: #{tpu_custom_call.1}
  #allocation0 [shape = 'u32[]', space=smem, size = 0x4, offset = 0x4, fixed_abs, tag = 'smem constant byte address 0x4 - core index']
  #allocation1 [shape = 'u32[144,128]{1,0:T(1,128)}', space=vmem, size = 0x12000, scoped, tag = 'internal scratch']
  %s0 = inlined_call_operand.hbm [shape: f32[64,128], index: 0, kind: input, shape index: {}]
  %s1 = inlined_call_operand.hbm [shape: f32[64,128], index: 1, kind: input, shape index: {}]
  %s2 = inlined_call_operand.hbm [shape: f32[8,128], index: 2, kind: output, shape index: {}]
  %s3 = sld [smem:[#allocation0]]
  $region30: #{tpu_custom_call.1} parent=0
    _
  %s5 = ssub.s32 1, %s3
  %s6 = scalar_select 0, %s5, %s3
  $region1: #{tpu_custom_call.1} parent=0
    #allocation2 [shape = 'u8[32768]{0}', space=vmem, size = 0x8000, scoped, tag = 'input window, operand 0, single buffered']
    #allocation3 [shape = 's32[1]{0}', space=sflag, size = 0x4, scoped, tag = 'scoped memory for tpu_custom_call.1']
    #allocation4 [shape = 's32[1]{0}', space=sflag, size = 0x4, scoped, tag = 'scoped memory for tpu_custom_call.1']
    #allocation5 [shape = 'u8[32768]{0}', space=vmem, size = 0x8000, scoped, tag = 'input window, operand 1, single buffered']
    #allocation6 [shape = 's32[1]{0}', space=sflag, size = 0x4, scoped, tag = 'scoped memory for tpu_custom_call.1']
    #allocation7 [shape = 'u8[4096]{0}', space=vmem, size = 0x1000, scoped, tag = 'output window, operand 0, single buffered']
    %7 = vsyncpa [#allocation3], 0
    %8 = vsyncpa [#allocation6], 0
    %9 = vsyncpa [#allocation4], 0
    // Predicated region
    $region2: #{tpu_custom_call.1} parent=1 // pred_check
      _
    $region3: #{tpu_custom_call.1} parent=1 // pred_check_branch
      %11 = sbr.rel (0) target = $region5
    $region4: #{tpu_custom_call.1} parent=1 // pred_region
      %s12 = sadd.s32 0, 0
      %s13 = smul.u32 8, %s12
      %s15 = ssub.s32 1024, 1024
      %16 = vsyncadd [#allocation3], %s15
      %s17 = smul.addr %s13, 128
      %s18 = scalar_lea.hbm %s0, %s17
      %s19 = sshll.u32 [#allocation2], 4
      %s20 = int_to_ptr.vmem [resolvable:$true] %s19
      %25 = dma.hbm_to_vmem [thread:$0]  %s18, 1024, %s20, [#allocation3], 128, 128, 8
    $region5: #{tpu_custom_call.1} parent=1 // pred_fallthru
      _
    // Predicated region
    $region6: #{tpu_custom_call.1} parent=1 // pred_check
      _
    $region7: #{tpu_custom_call.1} parent=1 // pred_check_branch
      %27 = sbr.rel (0) target = $region9
    $region8: #{tpu_custom_call.1} parent=1 // pred_region
      %s28 = sadd.s32 0, 0
      %s29 = smul.u32 8, %s28
      %s31 = ssub.s32 1024, 1024
      %32 = vsyncadd [#allocation6], %s31
      %s33 = smul.addr %s29, 128
      %s34 = scalar_lea.hbm %s1, %s33
      %s35 = sshll.u32 [#allocation5], 4
      %s36 = int_to_ptr.vmem [resolvable:$true] %s35
      %41 = dma.hbm_to_vmem [thread:$0]  %s34, 1024, %s36, [#allocation6], 128, 128, 8
    $region9: #{tpu_custom_call.1} parent=1 // pred_fallthru
      _
    // Predicated region
    $region10: #{tpu_custom_call.1} parent=1 // pred_check
      _
    $region11: #{tpu_custom_call.1} parent=1 // pred_check_branch
      %43 = sbr.rel (0) target = $region13
    $region12: #{tpu_custom_call.1} parent=1 // pred_region
      %44 = dma.done [#allocation3], 1024
    $region13: #{tpu_custom_call.1} parent=1 // pred_fallthru
      _
    // Predicated region
    $region14: #{tpu_custom_call.1} parent=1 // pred_check
      _
    $region15: #{tpu_custom_call.1} parent=1 // pred_check_branch
      %46 = sbr.rel (0) target = $region17
    $region16: #{tpu_custom_call.1} parent=1 // pred_region
      %47 = dma.done [#allocation6], 1024
    $region17: #{tpu_custom_call.1} parent=1 // pred_fallthru
      _
    %s48 = sadd.s32 0, 0
    %s49 = smul.u32 8, %s48
    %s50 = sadd.s32 0, 0
    %s51 = smul.u32 8, %s50
    %p52 = scmp.eq.s32.totalorder 0, 0
    // Predicated region
    $region18: #{tpu_custom_call.1} parent=1 // pred_check
      %p53 = pneg %p52
    $region19: #{tpu_custom_call.1} parent=1 // pred_check_branch
      %55 = sbr.rel (%p53) target = $region21
    $region20: #{tpu_custom_call.1} parent=1 // pred_region
      %56 = vst [vmem:[#allocation7] sm:$0xff] 0.0
    $region21: #{tpu_custom_call.1} parent=1 // pred_fallthru
      _
    %v57 = vld [vmem:[#allocation2] sm:$0xff]
    %v58 = vld [vmem:[#allocation2 + $0x8] sm:$0xff]
    %v59 = vld [vmem:[#allocation2 + $0x10] sm:$0xff]
    %v60 = vld [vmem:[#allocation2 + $0x18] sm:$0xff]
    %v61 = vld [vmem:[#allocation2 + $0x20] sm:$0xff]
    %v62 = vld [vmem:[#allocation2 + $0x28] sm:$0xff]
    %v63 = vld [vmem:[#allocation2 + $0x30] sm:$0xff]
    %v64 = vld [vmem:[#allocation2 + $0x38] sm:$0xff]
    %v65 = vld [vmem:[#allocation5] sm:$0xff]
    %v66 = vld [vmem:[#allocation5 + $0x8] sm:$0xff]
    %v67 = vld [vmem:[#allocation5 + $0x10] sm:$0xff]
    %v68 = vld [vmem:[#allocation5 + $0x18] sm:$0xff]
    %v69 = vld [vmem:[#allocation5 + $0x20] sm:$0xff]
    %v70 = vld [vmem:[#allocation5 + $0x28] sm:$0xff]
    %v71 = vld [vmem:[#allocation5 + $0x30] sm:$0xff]
    %v72 = vld [vmem:[#allocation5 + $0x38] sm:$0xff]
    %v73 = vadd.f32 %v57, 1e-08
    %v74 = vadd.f32 %v58, 1e-08
    %v75 = vadd.f32 %v59, 1e-08
    %v76 = vadd.f32 %v60, 1e-08
    %v77 = vadd.f32 %v61, 1e-08
    %v78 = vadd.f32 %v62, 1e-08
    %v79 = vadd.f32 %v63, 1e-08
    %v80 = vadd.f32 %v64, 1e-08
    %v81 = vsub.f32 1.0, %v65
    %v82 = vsub.f32 1.0, %v66
    %v83 = vsub.f32 1.0, %v67
    %v84 = vsub.f32 1.0, %v68
    %v85 = vsub.f32 1.0, %v69
    %v86 = vsub.f32 1.0, %v70
    %v87 = vsub.f32 1.0, %v71
    %v88 = vsub.f32 1.0, %v72
    %v89 = vadd.f32 %v81, 1e-08
    %v90 = vadd.f32 %v82, 1e-08
    %v91 = vadd.f32 %v83, 1e-08
    %v92 = vadd.f32 %v84, 1e-08
    %v93 = vadd.f32 %v85, 1e-08
    %v94 = vadd.f32 %v86, 1e-08
    %v95 = vadd.f32 %v87, 1e-08
    %v96 = vadd.f32 %v88, 1e-08
    %v97 = vmul.f32 %v73, %v89
    %v98 = vmul.f32 %v74, %v90
    %v99 = vmul.f32 %v75, %v91
    %v100 = vmul.f32 %v76, %v92
    %v101 = vmul.f32 %v77, %v93
    %v102 = vmul.f32 %v78, %v94
    %v103 = vmul.f32 %v79, %v95
    %v104 = vmul.f32 %v80, %v96
    %v105 = vlog2.pop %v97
    %v106 = vmul.f32 %v105, 0.6931472
    %v107 = vlog2.pop %v98
    %v108 = vmul.f32 %v107, 0.6931472
    %v109 = vlog2.pop %v99
    %v110 = vmul.f32 %v109, 0.6931472
    %v111 = vlog2.pop %v100
    %v112 = vmul.f32 %v111, 0.6931472
    %v113 = vlog2.pop %v101
    %v114 = vmul.f32 %v113, 0.6931472
    %v115 = vlog2.pop %v102
    %v116 = vmul.f32 %v115, 0.6931472
    %v117 = vlog2.pop %v103
    %v118 = vmul.f32 %v117, 0.6931472
    %v119 = vlog2.pop %v104
    %v120 = vmul.f32 %v119, 0.6931472
    %v121 = vld [vmem:[#allocation7] sm:$0xff]
    %v122 = vadd.f32 %v106, %v108
    %v123 = vadd.f32 %v122, %v110
    %v124 = vadd.f32 %v123, %v112
    %v125 = vadd.f32 %v124, %v114
    %v126 = vadd.f32 %v125, %v116
    %v127 = vadd.f32 %v126, %v118
    %v128 = vadd.f32 %v127, %v120
    %v129 = vadd.f32 %v121, %v128
    %130 = vst [vmem:[#allocation7] sm:$0xff] %v129
    // Predicated region
    $region22: #{tpu_custom_call.1} parent=1 // pred_check
      _
    $region23: #{tpu_custom_call.1} parent=1 // pred_check_branch
      %132 = sbr.rel (0) target = $region25
    $region24: #{tpu_custom_call.1} parent=1 // pred_region
      %s134 = ssub.s32 128, 128
      %135 = vsyncadd [#allocation4], %s134
      %s137 = sshll.u32 [#allocation7], 4
      %s138 = int_to_ptr.vmem [resolvable:$true] %s137
      %140 = dma.vmem_to_hbm [thread:$0]  %s138, 128, %s2, [#allocation4]
    $region25: #{tpu_custom_call.1} parent=1 // pred_fallthru
      _
    // Predicated region
    $region26: #{tpu_custom_call.1} parent=1 // pred_check
      _
    $region27: #{tpu_custom_call.1} parent=1 // pred_check_branch
      %142 = sbr.rel (0) target = $region29
    $region28: #{tpu_custom_call.1} parent=1 // pred_region
      %143 = dma.done [#allocation4], 128
    $region29: #{tpu_custom_call.1} parent=1 // pred_fallthru
      _
    %144 = vsyncpa [#allocation3], 1
    %145 = vsyncpa [#allocation6], 1
    %146 = vsyncpa [#allocation4], 1

</llo_original>
